<compile_context>
chip_gen: v5e
topology: v5e:2x2
jax: 0.10.0
libtpu: 0.0.40
codegen_flags: <defaults>
</compile_context>

<pallas_src>
import jax
import jax.numpy as jnp
from jax.experimental import pallas as pl
from jax.experimental.pallas import tpu as pltpu

INPUT_DIM = 64
HIDDEN_DIM = 256
OUTPUT_DIM = 28 * 28           # 784
OUT_PAD = 896                  # 7 * 128: lane-dense output width


def _round_up(x, m):
    return ((x + m - 1) // m) * m


def generator_kernel(x_ref, w1_ref, b1_ref, w2_ref, b2_ref, w3_ref, b3_ref, o_ref):
    """Whole MLP fused: bf16 matmuls on the MXU (f32 accum), ReLU/Tanh in f32 on VPU/EUP."""
    x = x_ref[...].astype(jnp.bfloat16)                       # (TB, 64) bf16

    # Layer 1: Linear + ReLU (bias-add / ReLU in f32)
    h1 = jnp.dot(x, w1_ref[...], preferred_element_type=jnp.float32) + b1_ref[...]
    h1 = jnp.maximum(h1, 0.0).astype(jnp.bfloat16)            # (TB, 256)

    # Layer 2: Linear + ReLU
    h2 = jnp.dot(h1, w2_ref[...], preferred_element_type=jnp.float32) + b2_ref[...]
    h2 = jnp.maximum(h2, 0.0).astype(jnp.bfloat16)            # (TB, 256)

    # Layer 3: Linear + Tanh (padded, lane-dense N=896)
    out = jnp.dot(h2, w3_ref[...], preferred_element_type=jnp.float32) + b3_ref[...]
    o_ref[...] = jnp.tanh(out).astype(o_ref.dtype)            # (TB, 896)


def generator_forward(noise, params, *, batch_tile=256):
    """noise: (B, INPUT_DIM) float32. Returns (B, OUTPUT_DIM) float32."""
    w1, b1, w2, b2, w3, b3 = params
    B = noise.shape[0]

    # Batch tile: 256 matches the v6e/v7x 256x256 MXU; small batches just round up to 8.
    TB = min(batch_tile, _round_up(B, 8))
    B_pad = _round_up(B, TB)
    if B_pad != B:
        noise = jnp.pad(noise, ((0, B_pad - B), (0, 0)))

    # Zero-pad the last layer to OUT_PAD columns (inert lanes) and cast weights to bf16.
    w3p = jnp.pad(w3, ((0, 0), (0, OUT_PAD - OUTPUT_DIM)))
    b3p = jnp.pad(b3, ((0, 0), (0, OUT_PAD - OUTPUT_DIM)))
    w1b = w1.astype(jnp.bfloat16)
    w2b = w2.astype(jnp.bfloat16)
    w3b = w3p.astype(jnp.bfloat16)

    grid = (B_pad // TB,)

    resident = lambda arr: pl.BlockSpec(arr.shape, lambda i: (0, 0))

    weight_bytes = (w1b.size + w2b.size + w3b.size) * 2 + (b1.size + b2.size + b3p.size) * 4
    cost = pl.CostEstimate(
        flops=2 * B_pad * (INPUT_DIM * HIDDEN_DIM
                           + HIDDEN_DIM * HIDDEN_DIM
                           + HIDDEN_DIM * OUT_PAD),
        transcendentals=B_pad * OUT_PAD,
        bytes_accessed=B_pad * INPUT_DIM * 4 + B_pad * OUT_PAD * 4 + weight_bytes,
    )

    out = pl.pallas_call(
        generator_kernel,
        out_shape=jax.ShapeDtypeStruct((B_pad, OUT_PAD), jnp.float32),
        grid=grid,
        in_specs=[
            pl.BlockSpec((TB, INPUT_DIM), lambda i: (i, 0)),   # activation tile (pipelined)
            resident(w1b), resident(b1),                       # weights/biases stay in VMEM
            resident(w2b), resident(b2),
            resident(w3b), resident(b3p),
        ],
        out_specs=pl.BlockSpec((TB, OUT_PAD), lambda i: (i, 0)),
        compiler_params=pltpu.CompilerParams(
            dimension_semantics=("parallel",),   # 2 TCs on v7x; harmless on v5e/v6e
            vmem_limit_bytes=32 << 20,           # conservative: fits v7x's 64 MiB VMEM
        ),
        cost_estimate=cost,
    )(noise, w1b, b1, w2b, b2, w3b, b3p)

    return out[:B, :OUTPUT_DIM]


def init_params(key):
    """Deterministic init mimicking nn.Linear default U(-1/sqrt(fan_in), 1/sqrt(fan_in)).

    Weights are (in, out); biases are (1, out) so they broadcast over the batch dim
    inside the kernel exactly like PyTorch's bias broadcast.
    """
    def linear(k, fan_in, fan_out):
        kw, kb = jax.random.split(k)
        bound = 1.0 / jnp.sqrt(jnp.float32(fan_in))
        w = jax.random.uniform(kw, (fan_in, fan_out), jnp.float32, -bound, bound)
        b = jax.random.uniform(kb, (1, fan_out), jnp.float32, -bound, bound)
        return w, b

    k1, k2, k3 = jax.random.split(key, 3)
    w1, b1 = linear(k1, INPUT_DIM, HIDDEN_DIM)
    w2, b2 = linear(k2, HIDDEN_DIM, HIDDEN_DIM)
    w3, b3 = linear(k3, HIDDEN_DIM, OUTPUT_DIM)
    return (w1, b1, w2, b2, w3, b3)


def reference_forward_f32(noise, params):
    """Pure-JAX f32 reference (matches the PyTorch module)."""
    w1, b1, w2, b2, w3, b3 = params
    h1 = jnp.maximum(noise @ w1 + b1, 0.0)
    h2 = jnp.maximum(h1 @ w2 + b2, 0.0)
    return jnp.tanh(h2 @ w3 + b3)


def reference_forward_bf16(noise, params):
    """Pure-JAX reference with the same bf16-input / f32-accumulate recipe as the kernel."""
    w1, b1, w2, b2, w3, b3 = params
    bf = jnp.bfloat16
    h1 = jnp.maximum(jnp.dot(noise.astype(bf), w1.astype(bf),
                             preferred_element_type=jnp.float32) + b1, 0.0)
    h2 = jnp.maximum(jnp.dot(h1.astype(bf), w2.astype(bf),
                             preferred_element_type=jnp.float32) + b2, 0.0)
    out = jnp.dot(h2.astype(bf), w3.astype(bf),
                  preferred_element_type=jnp.float32) + b3
    return jnp.tanh(out)


if __name__ == "__main__":
    key = jax.random.PRNGKey(0)
    pkey, nkey = jax.random.split(key)

    params = init_params(pkey)

    batch = 8
    noise = jax.random.normal(nkey, (batch, INPUT_DIM), jnp.float32)

    out = generator_forward(noise, params)
    out = jax.block_until_ready(out)
    assert out.shape == (batch, OUTPUT_DIM), out.shape

    # Tight check against a reference using the identical bf16-input recipe.
    ref_bf16 = reference_forward_bf16(noise, params)
    assert jnp.allclose(out, ref_bf16, atol=1e-2, rtol=1e-2), "mismatch vs bf16 reference"

    # Looser check against the full-f32 PyTorch-equivalent reference
    # (bf16 input rounding, f32 accumulation; tanh output is bounded).
    ref_f32 = reference_forward_f32(noise, params)
    assert jnp.allclose(out, ref_f32, atol=5e-2, rtol=0.0), "mismatch vs f32 reference"

    print("KERNEL_OK")
</pallas_src>

<mosaic_0001>
module attributes {stable_mosaic.version = 11 : i64} {
  func.func @generator_kernel(%arg0: i32, %arg1: memref<8x64xf32, #tpu.memory_space<vmem>>, %arg2: memref<64x256xbf16, #tpu.memory_space<vmem>>, %arg3: memref<1x256xf32, #tpu.memory_space<vmem>>, %arg4: memref<256x256xbf16, #tpu.memory_space<vmem>>, %arg5: memref<1x256xf32, #tpu.memory_space<vmem>>, %arg6: memref<256x896xbf16, #tpu.memory_space<vmem>>, %arg7: memref<1x896xf32, #tpu.memory_space<vmem>>, %arg8: memref<8x896xf32, #tpu.memory_space<vmem>>) attributes {dimension_semantics = [#tpu.dimension_semantics<parallel>], iteration_bounds = array<i64: 1>, scalar_prefetch = 0 : i64, scratch_operands = 0 : i64, tpu.core_type = #tpu.core_type<tc>, window_params = [{transform_indices = @transform_0, window_bounds = array<i64: 8, 64>}, {pipeline_mode = #tpu.pipeline_mode<synchronous>, transform_indices = @transform_1, window_bounds = array<i64: 64, 256>}, {pipeline_mode = #tpu.pipeline_mode<synchronous>, transform_indices = @transform_2, window_bounds = array<i64: 1, 256>}, {pipeline_mode = #tpu.pipeline_mode<synchronous>, transform_indices = @transform_3, window_bounds = array<i64: 256, 256>}, {pipeline_mode = #tpu.pipeline_mode<synchronous>, transform_indices = @transform_4, window_bounds = array<i64: 1, 256>}, {pipeline_mode = #tpu.pipeline_mode<synchronous>, transform_indices = @transform_5, window_bounds = array<i64: 256, 896>}, {pipeline_mode = #tpu.pipeline_mode<synchronous>, transform_indices = @transform_6, window_bounds = array<i64: 1, 896>}, {transform_indices = @transform_7, window_bounds = array<i64: 8, 896>}]} {
    %c0 = arith.constant 0 : index
    %c0_0 = arith.constant 0 : index
    %0 = vector.load %arg1[%c0, %c0_0] : memref<8x64xf32, #tpu.memory_space<vmem>>, vector<8x64xf32>
    %1 = arith.truncf %0 : vector<8x64xf32> to vector<8x64xbf16>
    %c0_1 = arith.constant 0 : index
    %c0_2 = arith.constant 0 : index
    %2 = vector.load %arg2[%c0_1, %c0_2] : memref<64x256xbf16, #tpu.memory_space<vmem>>, vector<64x256xbf16>
    %cst = arith.constant dense<0.000000e+00> : vector<8x256xf32>
    %3 = tpu.matmul %1, %2, %cst {dimension_numbers = #tpu.dot_dimension_numbers<[1], [0], [0], [1], [0, 0, 1, 1], [], []>} : vector<8x64xbf16>, vector<64x256xbf16>, vector<8x256xf32> -> vector<8x256xf32>
    %c0_3 = arith.constant 0 : index
    %c0_4 = arith.constant 0 : index
    %4 = vector.load %arg3[%c0_3, %c0_4] : memref<1x256xf32, #tpu.memory_space<vmem>>, vector<1x256xf32>
    %5 = vector.broadcast %4 : vector<1x256xf32> to vector<8x256xf32>
    %6 = arith.addf %3, %5 : vector<8x256xf32>
    %cst_5 = arith.constant 0.000000e+00 : f32
    %7 = vector.broadcast %cst_5 : f32 to vector<8x256xf32>
    %8 = arith.maximumf %6, %7 : vector<8x256xf32>
    %9 = arith.truncf %8 : vector<8x256xf32> to vector<8x256xbf16>
    %c0_6 = arith.constant 0 : index
    %c0_7 = arith.constant 0 : index
    %10 = vector.load %arg4[%c0_6, %c0_7] : memref<256x256xbf16, #tpu.memory_space<vmem>>, vector<256x256xbf16>
    %cst_8 = arith.constant dense<0.000000e+00> : vector<8x256xf32>
    %11 = tpu.matmul %9, %10, %cst_8 {dimension_numbers = #tpu.dot_dimension_numbers<[1], [0], [0], [1], [0, 0, 1, 1], [], []>} : vector<8x256xbf16>, vector<256x256xbf16>, vector<8x256xf32> -> vector<8x256xf32>
    %c0_9 = arith.constant 0 : index
    %c0_10 = arith.constant 0 : index
    %12 = vector.load %arg5[%c0_9, %c0_10] : memref<1x256xf32, #tpu.memory_space<vmem>>, vector<1x256xf32>
    %13 = vector.broadcast %12 : vector<1x256xf32> to vector<8x256xf32>
    %14 = arith.addf %11, %13 : vector<8x256xf32>
    %cst_11 = arith.constant 0.000000e+00 : f32
    %15 = vector.broadcast %cst_11 : f32 to vector<8x256xf32>
    %16 = arith.maximumf %14, %15 : vector<8x256xf32>
    %17 = arith.truncf %16 : vector<8x256xf32> to vector<8x256xbf16>
    %c0_12 = arith.constant 0 : index
    %c0_13 = arith.constant 0 : index
    %18 = vector.load %arg6[%c0_12, %c0_13] : memref<256x896xbf16, #tpu.memory_space<vmem>>, vector<256x896xbf16>
    %cst_14 = arith.constant dense<0.000000e+00> : vector<8x896xf32>
    %19 = tpu.matmul %17, %18, %cst_14 {dimension_numbers = #tpu.dot_dimension_numbers<[1], [0], [0], [1], [0, 0, 1, 1], [], []>} : vector<8x256xbf16>, vector<256x896xbf16>, vector<8x896xf32> -> vector<8x896xf32>
    %c0_15 = arith.constant 0 : index
    %c0_16 = arith.constant 0 : index
    %20 = vector.load %arg7[%c0_15, %c0_16] : memref<1x896xf32, #tpu.memory_space<vmem>>, vector<1x896xf32>
    %21 = vector.broadcast %20 : vector<1x896xf32> to vector<8x896xf32>
    %22 = arith.addf %19, %21 : vector<8x896xf32>
    %23 = math.tanh %22 : vector<8x896xf32>
    %c0_17 = arith.constant 0 : index
    %c0_18 = arith.constant 0 : index
    %24 = vector.load %arg8[%c0_17, %c0_18] : memref<8x896xf32, #tpu.memory_space<vmem>>, vector<8x896xf32>
    tpu.vector_store %arg8[%c0_17, %c0_18], %23 {strides = array<i32>} : memref<8x896xf32, #tpu.memory_space<vmem>>, vector<8x896xf32>,
    return
  }
  func.func @transform_0(%arg0: i32) -> (i32, i32) {
    %c0_i32 = arith.constant 0 : i32
    %c0_i32_0 = arith.constant 0 : i32
    return %arg0, %c0_i32 : i32, i32
  }
  func.func @transform_1(%arg0: i32) -> (i32, i32) {
    %c0_i32 = arith.constant 0 : i32
    %c0_i32_0 = arith.constant 0 : i32
    %c0_i32_1 = arith.constant 0 : i32
    return %c0_i32, %c0_i32_0 : i32, i32
  }
  func.func @transform_2(%arg0: i32) -> (i32, i32) {
    %c0_i32 = arith.constant 0 : i32
    %c0_i32_0 = arith.constant 0 : i32
    %c0_i32_1 = arith.constant 0 : i32
    return %c0_i32, %c0_i32_0 : i32, i32
  }
  func.func @transform_3(%arg0: i32) -> (i32, i32) {
    %c0_i32 = arith.constant 0 : i32
    %c0_i32_0 = arith.constant 0 : i32
    %c0_i32_1 = arith.constant 0 : i32
    return %c0_i32, %c0_i32_0 : i32, i32
  }
  func.func @transform_4(%arg0: i32) -> (i32, i32) {
    %c0_i32 = arith.constant 0 : i32
    %c0_i32_0 = arith.constant 0 : i32
    %c0_i32_1 = arith.constant 0 : i32
    return %c0_i32, %c0_i32_0 : i32, i32
  }
  func.func @transform_5(%arg0: i32) -> (i32, i32) {
    %c0_i32 = arith.constant 0 : i32
    %c0_i32_0 = arith.constant 0 : i32
    %c0_i32_1 = arith.constant 0 : i32
    return %c0_i32, %c0_i32_0 : i32, i32
  }
  func.func @transform_6(%arg0: i32) -> (i32, i32) {
    %c0_i32 = arith.constant 0 : i32
    %c0_i32_0 = arith.constant 0 : i32
    %c0_i32_1 = arith.constant 0 : i32
    return %c0_i32, %c0_i32_0 : i32, i32
  }
  func.func @transform_7(%arg0: i32) -> (i32, i32) {
    %c0_i32 = arith.constant 0 : i32
    %c0_i32_0 = arith.constant 0 : i32
    return %arg0, %c0_i32 : i32, i32
  }
}

</mosaic_0001>

<llo_original>
// kernel: tpu_custom_call.1
$region0: #{tpu_custom_call.1}
  #allocation0 [shape = 'u32[]', space=smem, size = 0x4, offset = 0x4, fixed_abs, tag = 'smem constant byte address 0x4 - core index']
  #allocation1 [shape = 'u32[72,128]{1,0:T(1,128)}', space=vmem, size = 0x9000, scoped, tag = 'internal scratch']
  %s0 = inlined_call_operand.hbm [shape: f32[8,64], index: 0, kind: input, shape index: {}]
  %s1 = inlined_call_operand.hbm [shape: bf16[64,256], index: 1, kind: input, shape index: {}]
  %s2 = inlined_call_operand.hbm [shape: f32[1,256], index: 2, kind: input, shape index: {}]
  %s3 = inlined_call_operand.hbm [shape: bf16[256,256], index: 3, kind: input, shape index: {}]
  %s4 = inlined_call_operand.vmem [shape: f32[1,256], index: 4, kind: input, shape index: {}]
  %s5 = inlined_call_operand.hbm [shape: bf16[256,896], index: 5, kind: input, shape index: {}]
  %s6 = inlined_call_operand.hbm [shape: f32[1,896], index: 6, kind: input, shape index: {}]
  %s7 = inlined_call_operand.hbm [shape: f32[8,896], index: 7, kind: output, shape index: {}]
  %s8 = sld [smem:[#allocation0]]
  $region62: #{tpu_custom_call.1} parent=0
    _
  %s10 = ssub.s32 1, %s8
  %s11 = scalar_select 0, %s10, %s8
  $region1: #{tpu_custom_call.1} parent=0
    #allocation2 [shape = 'u8[4096]{0}', space=vmem, size = 0x1000, scoped, tag = 'input window, operand 0, single buffered']
    #allocation3 [shape = 's32[1]{0}', space=sflag, size = 0x4, scoped, tag = 'scoped memory for tpu_custom_call.1']
    #allocation4 [shape = 's32[1]{0}', space=sflag, size = 0x4, scoped, tag = 'scoped memory for tpu_custom_call.1']
    #allocation5 [shape = 'u8[32768]{0}', space=vmem, size = 0x8000, scoped, tag = 'input window, operand 1, single buffered']
    #allocation6 [shape = 's32[1]{0}', space=sflag, size = 0x4, scoped, tag = 'scoped memory for tpu_custom_call.1']
    #allocation7 [shape = 'u8[1024]{0}', space=vmem, size = 0x400, scoped, tag = 'input window, operand 2, single buffered']
    #allocation8 [shape = 'u8[131072]{0}', space=vmem, size = 0x20000, scoped, tag = 'input window, operand 3, single buffered']
    #allocation9 [shape = 's32[1]{0}', space=sflag, size = 0x4, scoped, tag = 'scoped memory for tpu_custom_call.1']
    #allocation10 [shape = 'u8[458752]{0}', space=vmem, size = 0x70000, scoped, tag = 'input window, operand 5, single buffered']
    #allocation11 [shape = 'u8[3584]{0}', space=vmem, size = 0x1000, scoped, tag = 'input window, operand 6, single buffered']
    #allocation12 [shape = 's32[1]{0}', space=sflag, size = 0x4, scoped, tag = 'scoped memory for tpu_custom_call.1']
    #allocation13 [shape = 'u8[28672]{0}', space=vmem, size = 0x7000, scoped, tag = 'output window, operand 0, single buffered']
    %12 = vsyncpa [#allocation3], 0
    %13 = vsyncpa [#allocation6], 0
    %14 = vsyncpa [#allocation9], 0
    %15 = vsyncpa [#allocation12], 0
    %16 = vsyncpa [#allocation4], 0
    // Predicated region
    $region2: #{tpu_custom_call.1} parent=1 // pred_check
      _
    $region3: #{tpu_custom_call.1} parent=1 // pred_check_branch
      %18 = sbr.rel (0) target = $region5
    $region4: #{tpu_custom_call.1} parent=1 // pred_region
      %20 = vsyncadd [#allocation3], 0
      %s22 = sshll.u32 %s0, 4
      %s23 = int_to_ptr.hbm [resolvable:$true] %s22
      %s24 = sshll.u32 [#allocation2], 4
      %s25 = int_to_ptr.vmem [resolvable:$true] %s24
      %27 = dma.hbm_to_vmem [thread:$0]  %s23, 128, %s25, [#allocation3]
    $region5: #{tpu_custom_call.1} parent=1 // pred_fallthru
      _
    // Predicated region
    $region6: #{tpu_custom_call.1} parent=1 // pred_check
      _
    $region7: #{tpu_custom_call.1} parent=1 // pred_check_branch
      %29 = sbr.rel (0) target = $region9
    $region8: #{tpu_custom_call.1} parent=1 // pred_region
      %31 = vsyncadd [#allocation6], 0
      %s32 = sshll.u32 %s1, 4
      %s33 = int_to_ptr.hbm [resolvable:$true] %s32
      %s34 = sshll.u32 [#allocation5], 4
      %s35 = int_to_ptr.vmem [resolvable:$true] %s34
      %40 = dma.hbm_to_vmem [thread:$0]  %s33, 1024, %s35, [#allocation6], 128, 128, 8
    $region9: #{tpu_custom_call.1} parent=1 // pred_fallthru
      _
    // Predicated region
    $region10: #{tpu_custom_call.1} parent=1 // pred_check
      _
    $region11: #{tpu_custom_call.1} parent=1 // pred_check_branch
      %42 = sbr.rel (0) target = $region13
    $region12: #{tpu_custom_call.1} parent=1 // pred_region
      %44 = vsyncadd [#allocation6], 0
      %s46 = sshll.u32 %s2, 4
      %s47 = int_to_ptr.hbm [resolvable:$true] %s46
      %s48 = sshll.u32 [#allocation7], 4
      %s49 = int_to_ptr.vmem [resolvable:$true] %s48
      %51 = dma.hbm_to_vmem [thread:$0]  %s47, 32, %s49, [#allocation6]
    $region13: #{tpu_custom_call.1} parent=1 // pred_fallthru
      _
    // Predicated region
    $region14: #{tpu_custom_call.1} parent=1 // pred_check
      _
    $region15: #{tpu_custom_call.1} parent=1 // pred_check_branch
      %53 = sbr.rel (0) target = $region17
    $region16: #{tpu_custom_call.1} parent=1 // pred_region
      %55 = vsyncadd [#allocation9], 0
      %s56 = sshll.u32 %s3, 4
      %s57 = int_to_ptr.hbm [resolvable:$true] %s56
      %s58 = sshll.u32 [#allocation8], 4
      %s59 = int_to_ptr.vmem [resolvable:$true] %s58
      %64 = dma.hbm_to_vmem [thread:$0]  %s57, 4096, %s59, [#allocation9], 128, 128, 8
    $region17: #{tpu_custom_call.1} parent=1 // pred_fallthru
      _
    // Predicated region
    $region18: #{tpu_custom_call.1} parent=1 // pred_check
      _
    $region19: #{tpu_custom_call.1} parent=1 // pred_check_branch
      %66 = sbr.rel (0) target = $region21
    $region20: #{tpu_custom_call.1} parent=1 // pred_region
      _
    $region21: #{tpu_custom_call.1} parent=1 // pred_fallthru
      _
    // Predicated region
    $region22: #{tpu_custom_call.1} parent=1 // pred_check
      _
    $region23: #{tpu_custom_call.1} parent=1 // pred_check_branch
      %68 = sbr.rel (0) target = $region25
    $region24: #{tpu_custom_call.1} parent=1 // pred_region
      %70 = vsyncadd [#allocation9], 0
      %s71 = sshll.u32 %s5, 4
      %s72 = int_to_ptr.hbm [resolvable:$true] %s71
      %s73 = sshll.u32 [#allocation10], 4
      %s74 = int_to_ptr.vmem [resolvable:$true] %s73
      %79 = dma.hbm_to_vmem [thread:$0]  %s72, 14336, %s74, [#allocation9], 448, 448, 28
    $region25: #{tpu_custom_call.1} parent=1 // pred_fallthru
      _
    // Predicated region
    $region26: #{tpu_custom_call.1} parent=1 // pred_check
      _
    $region27: #{tpu_custom_call.1} parent=1 // pred_check_branch
      %81 = sbr.rel (0) target = $region29
    $region28: #{tpu_custom_call.1} parent=1 // pred_region
      %83 = vsyncadd [#allocation12], 0
      %s85 = sshll.u32 %s6, 4
      %s86 = int_to_ptr.hbm [resolvable:$true] %s85
      %s87 = sshll.u32 [#allocation11], 4
      %s88 = int_to_ptr.vmem [resolvable:$true] %s87
      %90 = dma.hbm_to_vmem [thread:$0]  %s86, 112, %s88, [#allocation12]
    $region29: #{tpu_custom_call.1} parent=1 // pred_fallthru
      _
    // Predicated region
    $region30: #{tpu_custom_call.1} parent=1 // pred_check
      _
    $region31: #{tpu_custom_call.1} parent=1 // pred_check_branch
      %92 = sbr.rel (0) target = $region33
    $region32: #{tpu_custom_call.1} parent=1 // pred_region
      %94 = dma.done [#allocation3], 128
    $region33: #{tpu_custom_call.1} parent=1 // pred_fallthru
      _
    // Predicated region
    $region34: #{tpu_custom_call.1} parent=1 // pred_check
      _
    $region35: #{tpu_custom_call.1} parent=1 // pred_check_branch
      %96 = sbr.rel (0) target = $region37
    $region36: #{tpu_custom_call.1} parent=1 // pred_region
      %98 = dma.done [#allocation6], 1024
    $region37: #{tpu_custom_call.1} parent=1 // pred_fallthru
      _
    // Predicated region
    $region38: #{tpu_custom_call.1} parent=1 // pred_check
      _
    $region39: #{tpu_custom_call.1} parent=1 // pred_check_branch
      %100 = sbr.rel (0) target = $region41
    $region40: #{tpu_custom_call.1} parent=1 // pred_region
      %102 = dma.done [#allocation6], 32
    $region41: #{tpu_custom_call.1} parent=1 // pred_fallthru
      _
    // Predicated region
    $region42: #{tpu_custom_call.1} parent=1 // pred_check
      _
    $region43: #{tpu_custom_call.1} parent=1 // pred_check_branch
      %104 = sbr.rel (0) target = $region45
    $region44: #{tpu_custom_call.1} parent=1 // pred_region
      %106 = dma.done [#allocation9], 4096
    $region45: #{tpu_custom_call.1} parent=1 // pred_fallthru
      _
    // Predicated region
    $region46: #{tpu_custom_call.1} parent=1 // pred_check
      _
    $region47: #{tpu_custom_call.1} parent=1 // pred_check_branch
      %108 = sbr.rel (0) target = $region49
    $region48: #{tpu_custom_call.1} parent=1 // pred_region
      %110 = dma.done [#allocation9], 14336
    $region49: #{tpu_custom_call.1} parent=1 // pred_fallthru
      _
    // Predicated region
    $region50: #{tpu_custom_call.1} parent=1 // pred_check
      _
    $region51: #{tpu_custom_call.1} parent=1 // pred_check_branch
      %112 = sbr.rel (0) target = $region53
    $region52: #{tpu_custom_call.1} parent=1 // pred_region
      %114 = dma.done [#allocation12], 112
    $region53: #{tpu_custom_call.1} parent=1 // pred_fallthru
      _
    %v116 = vld [vmem:[#allocation2] sm:$0xff]
    %v117 = vpack.c.bf16 %v116, %v116
    %v118 = vld [vmem:[#allocation5] sm:$0xff]
    %v119 = vld [vmem:[#allocation5 + $0x8] sm:$0xff]
    %v120 = vld [vmem:[#allocation5 + $0x10] sm:$0xff]
    %v121 = vld [vmem:[#allocation5 + $0x18] sm:$0xff]
    %v122 = vld [vmem:[#allocation5 + $0x20] sm:$0xff]
    %v123 = vld [vmem:[#allocation5 + $0x28] sm:$0xff]
    %v124 = vld [vmem:[#allocation5 + $0x30] sm:$0xff]
    %v125 = vld [vmem:[#allocation5 + $0x38] sm:$0xff]
    %v126 = vld [vmem:[#allocation7] sm:$0x3]
    %v128 = vperm.slane %v126, 0
    %v129 = vperm.slane %v126, 1
    %v140 = vunpack.c.l.b16 %v118
    %v141 = vunpack.c.h.b16 %v118
    %v142 = vunpack.c.l.b16 %v119
    %v143 = vunpack.c.h.b16 %v119
    %v144 = vunpack.c.l.b16 %v120
    %v145 = vunpack.c.h.b16 %v120
    %v146 = vunpack.c.l.b16 %v121
    %v147 = vunpack.c.h.b16 %v121
    %v148 = vunpack.c.l.b16 %v122
    %v149 = vunpack.c.h.b16 %v122
    %v150 = vunpack.c.l.b16 %v123
    %v151 = vunpack.c.h.b16 %v123
    %v152 = vunpack.c.l.b16 %v124
    %v153 = vunpack.c.h.b16 %v124
    %v154 = vunpack.c.l.b16 %v125
    %v155 = vunpack.c.h.b16 %v125
    %v156 = vpack.c.b16 %v142, %v140
    %v157 = vpack.c.b16 %v143, %v141
    %v158 = vpack.c.b16 %v146, %v144
    %v159 = vpack.c.b16 %v147, %v145
    %v160 = vpack.c.b16 %v150, %v148
    %v161 = vpack.c.b16 %v151, %v149
    %v162 = vpack.c.b16 %v154, %v152
    %v163 = vpack.c.b16 %v155, %v153
    %vm172 = vcmask 523264
    %v174 = vsel %vm172, %v117, 0
    %176 = vmatpush.bf16.msra.mxu0 0
    %177 = vmatpush.bf16.msra.mxu0 0
    %178 = vmatpush.bf16.msra.mxu0 0
    %179 = vmatpush.bf16.msra.mxu0 0
    %180 = vmatpush.bf16.msra.mxu0 %v162
    %181 = vmatpush.bf16.msra.mxu0 %v160
    %182 = vmatpush.bf16.msra.mxu0 %v158
    %183 = vmatpush.bf16.msra.mxu0 %v156
    %184 = vmatmul.bf16.gmra.mxu0 %v174
    %v185 = vpop.f32.mrf.mxu0
    %v186 = vadd.f32 %v128, %v185
    %v187 = vpop.f32.mrf.mxu0
    %188 = vdwg.mxu0
    %189 = vmatpush.bf16.msra.mxu0 0
    %190 = vmatpush.bf16.msra.mxu0 0
    %191 = vmatpush.bf16.msra.mxu0 0
    %192 = vmatpush.bf16.msra.mxu0 0
    %193 = vmatpush.bf16.msra.mxu0 %v163
    %194 = vmatpush.bf16.msra.mxu0 %v161
    %195 = vmatpush.bf16.msra.mxu0 %v159
    %196 = vmatpush.bf16.msra.mxu0 %v157
    %197 = vmatmul.bf16.gmra.mxu0 %v174
    %v198 = vpop.f32.mrf.mxu0
    %v199 = vadd.f32 %v129, %v198
    %v200 = vpop.f32.mrf.mxu0
    %201 = vdwg.mxu0
    %v202 = vmax.f32 %v186, 0.0
    %v203 = vmax.f32 %v199, 0.0
    %v204 = vpack.c.bf16 %v202, %v202
    %v205 = vpack.c.bf16 %v203, %v203
    %v206 = vld [vmem:[#allocation8] sm:$0xff]
    %v207 = vld [vmem:[#allocation8 + $0x8] sm:$0xff]
    %v208 = vld [vmem:[#allocation8 + $0x10] sm:$0xff]
    %v209 = vld [vmem:[#allocation8 + $0x18] sm:$0xff]
    %v210 = vld [vmem:[#allocation8 + $0x20] sm:$0xff]
    %v211 = vld [vmem:[#allocation8 + $0x28] sm:$0xff]
    %v212 = vld [vmem:[#allocation8 + $0x30] sm:$0xff]
    %v213 = vld [vmem:[#allocation8 + $0x38] sm:$0xff]
    %v214 = vld [vmem:[#allocation8 + $0x40] sm:$0xff]
    %v215 = vld [vmem:[#allocation8 + $0x48] sm:$0xff]
    %v216 = vld [vmem:[#allocation8 + $0x50] sm:$0xff]
    %v217 = vld [vmem:[#allocation8 + $0x58] sm:$0xff]
    %v218 = vld [vmem:[#allocation8 + $0x60] sm:$0xff]
    %v219 = vld [vmem:[#allocation8 + $0x68] sm:$0xff]
    %v220 = vld [vmem:[#allocation8 + $0x70] sm:$0xff]
    %v221 = vld [vmem:[#allocation8 + $0x78] sm:$0xff]
    %v222 = vld [vmem:[#allocation8 + $0x80] sm:$0xff]
    %v223 = vld [vmem:[#allocation8 + $0x88] sm:$0xff]
    %v224 = vld [vmem:[#allocation8 + $0x90] sm:$0xff]
    %v225 = vld [vmem:[#allocation8 + $0x98] sm:$0xff]
    %v226 = vld [vmem:[#allocation8 + $0xa0] sm:$0xff]
    %v227 = vld [vmem:[#allocation8 + $0xa8] sm:$0xff]
    %v228 = vld [vmem:[#allocation8 + $0xb0] sm:$0xff]
    %v229 = vld [vmem:[#allocation8 + $0xb8] sm:$0xff]
    %v230 = vld [vmem:[#allocation8 + $0xc0] sm:$0xff]
    %v231 = vld [vmem:[#allocation8 + $0xc8] sm:$0xff]
    %v232 = vld [vmem:[#allocation8 + $0xd0] sm:$0xff]
    %v233 = vld [vmem:[#allocation8 + $0xd8] sm:$0xff]
    %v234 = vld [vmem:[#allocation8 + $0xe0] sm:$0xff]
    %v235 = vld [vmem:[#allocation8 + $0xe8] sm:$0xff]
    %v236 = vld [vmem:[#allocation8 + $0xf0] sm:$0xff]
    %v237 = vld [vmem:[#allocation8 + $0xf8] sm:$0xff]
    %v238 = vld [vmem:[%s4] sm:$0x3]
    %v240 = vperm.slane %v238, 0
    %v241 = vperm.slane %v238, 1
    %v276 = vunpack.c.l.b16 %v206
    %v277 = vunpack.c.h.b16 %v206
    %v278 = vunpack.c.l.b16 %v207
    %v279 = vunpack.c.h.b16 %v207
    %v280 = vunpack.c.l.b16 %v208
    %v281 = vunpack.c.h.b16 %v208
    %v282 = vunpack.c.l.b16 %v209
    %v283 = vunpack.c.h.b16 %v209
    %v284 = vunpack.c.l.b16 %v210
    %v285 = vunpack.c.h.b16 %v210
    %v286 = vunpack.c.l.b16 %v211
    %v287 = vunpack.c.h.b16 %v211
    %v288 = vunpack.c.l.b16 %v212
    %v289 = vunpack.c.h.b16 %v212
    %v290 = vunpack.c.l.b16 %v213
    %v291 = vunpack.c.h.b16 %v213
    %v292 = vunpack.c.l.b16 %v214
    %v293 = vunpack.c.h.b16 %v214
    %v294 = vunpack.c.l.b16 %v215
    %v295 = vunpack.c.h.b16 %v215
    %v296 = vunpack.c.l.b16 %v216
    %v297 = vunpack.c.h.b16 %v216
    %v298 = vunpack.c.l.b16 %v217
    %v299 = vunpack.c.h.b16 %v217
    %v300 = vunpack.c.l.b16 %v218
    %v301 = vunpack.c.h.b16 %v218
    %v302 = vunpack.c.l.b16 %v219
    %v303 = vunpack.c.h.b16 %v219
    %v304 = vunpack.c.l.b16 %v220
    %v305 = vunpack.c.h.b16 %v220
    %v306 = vunpack.c.l.b16 %v221
    %v307 = vunpack.c.h.b16 %v221
    %v308 = vunpack.c.l.b16 %v222
    %v309 = vunpack.c.h.b16 %v222
    %v310 = vunpack.c.l.b16 %v223
    %v311 = vunpack.c.h.b16 %v223
    %v312 = vunpack.c.l.b16 %v224
    %v313 = vunpack.c.h.b16 %v224
    %v314 = vunpack.c.l.b16 %v225
    %v315 = vunpack.c.h.b16 %v225
    %v316 = vunpack.c.l.b16 %v226
    %v317 = vunpack.c.h.b16 %v226
    %v318 = vunpack.c.l.b16 %v227
    %v319 = vunpack.c.h.b16 %v227
    %v320 = vunpack.c.l.b16 %v228
    %v321 = vunpack.c.h.b16 %v228
    %v322 = vunpack.c.l.b16 %v229
    %v323 = vunpack.c.h.b16 %v229
    %v324 = vunpack.c.l.b16 %v230
    %v325 = vunpack.c.h.b16 %v230
    %v326 = vunpack.c.l.b16 %v231
    %v327 = vunpack.c.h.b16 %v231
    %v328 = vunpack.c.l.b16 %v232
    %v329 = vunpack.c.h.b16 %v232
    %v330 = vunpack.c.l.b16 %v233
    %v331 = vunpack.c.h.b16 %v233
    %v332 = vunpack.c.l.b16 %v234
    %v333 = vunpack.c.h.b16 %v234
    %v334 = vunpack.c.l.b16 %v235
    %v335 = vunpack.c.h.b16 %v235
    %v336 = vunpack.c.l.b16 %v236
    %v337 = vunpack.c.h.b16 %v236
    %v338 = vunpack.c.l.b16 %v237
    %v339 = vunpack.c.h.b16 %v237
    %v340 = vpack.c.b16 %v278, %v276
    %v341 = vpack.c.b16 %v279, %v277
    %v342 = vpack.c.b16 %v282, %v280
    %v343 = vpack.c.b16 %v283, %v281
    %v344 = vpack.c.b16 %v286, %v284
    %v345 = vpack.c.b16 %v287, %v285
    %v346 = vpack.c.b16 %v290, %v288
    %v347 = vpack.c.b16 %v291, %v289
    %v348 = vpack.c.b16 %v294, %v292
    %v349 = vpack.c.b16 %v295, %v293
    %v350 = vpack.c.b16 %v298, %v296
    %v351 = vpack.c.b16 %v299, %v297
    %v352 = vpack.c.b16 %v302, %v300
    %v353 = vpack.c.b16 %v303, %v301
    %v354 = vpack.c.b16 %v306, %v304
    %v355 = vpack.c.b16 %v307, %v305
    %v356 = vpack.c.b16 %v310, %v308
    %v357 = vpack.c.b16 %v311, %v309
    %v358 = vpack.c.b16 %v314, %v312
    %v359 = vpack.c.b16 %v315, %v313
    %v360 = vpack.c.b16 %v318, %v316
    %v361 = vpack.c.b16 %v319, %v317
    %v362 = vpack.c.b16 %v322, %v320
    %v363 = vpack.c.b16 %v323, %v321
    %v364 = vpack.c.b16 %v326, %v324
    %v365 = vpack.c.b16 %v327, %v325
    %v366 = vpack.c.b16 %v330, %v328
    %v367 = vpack.c.b16 %v331, %v329
    %v368 = vpack.c.b16 %v334, %v332
    %v369 = vpack.c.b16 %v335, %v333
    %v370 = vpack.c.b16 %v338, %v336
    %v371 = vpack.c.b16 %v339, %v337
    %404 = vmatpush.bf16.msra.mxu0 %v354
    %405 = vmatpush.bf16.msra.mxu0 %v352
    %406 = vmatpush.bf16.msra.mxu0 %v350
    %407 = vmatpush.bf16.msra.mxu0 %v348
    %408 = vmatpush.bf16.msra.mxu0 %v346
    %409 = vmatpush.bf16.msra.mxu0 %v344
    %410 = vmatpush.bf16.msra.mxu0 %v342
    %411 = vmatpush.bf16.msra.mxu0 %v340
    %412 = vmatmul.bf16.gmra.mxu0 %v204
    %v413 = vpop.f32.mrf.mxu0
    %v414 = vadd.f32 %v240, %v413
    %v415 = vpop.f32.mrf.mxu0
    %416 = vdwg.mxu0
    %417 = vmatpush.bf16.msra.mxu0 %v370
    %418 = vmatpush.bf16.msra.mxu0 %v368
    %419 = vmatpush.bf16.msra.mxu0 %v366
    %420 = vmatpush.bf16.msra.mxu0 %v364
    %421 = vmatpush.bf16.msra.mxu0 %v362
    %422 = vmatpush.bf16.msra.mxu0 %v360
    %423 = vmatpush.bf16.msra.mxu0 %v358
    %424 = vmatpush.bf16.msra.mxu0 %v356
    %425 = vmatmul.bf16.gmra.mxu0 %v205
    %v426 = vpop.f32.mrf.mxu0
    %v427 = vadd.f32 %v414, %v426
    %v428 = vpop.f32.mrf.mxu0
    %429 = vdwg.mxu0
    %430 = vmatpush.bf16.msra.mxu0 %v355
    %431 = vmatpush.bf16.msra.mxu0 %v353
    %432 = vmatpush.bf16.msra.mxu0 %v351
    %433 = vmatpush.bf16.msra.mxu0 %v349
    %434 = vmatpush.bf16.msra.mxu0 %v347
    %435 = vmatpush.bf16.msra.mxu0 %v345
    %436 = vmatpush.bf16.msra.mxu0 %v343
    %437 = vmatpush.bf16.msra.mxu0 %v341
    %438 = vmatmul.bf16.gmra.mxu0 %v204
    %v439 = vpop.f32.mrf.mxu0
    %v440 = vadd.f32 %v241, %v439
    %v441 = vpop.f32.mrf.mxu0
    %442 = vdwg.mxu0
    %443 = vmatpush.bf16.msra.mxu0 %v371
    %444 = vmatpush.bf16.msra.mxu0 %v369
    %445 = vmatpush.bf16.msra.mxu0 %v367
    %446 = vmatpush.bf16.msra.mxu0 %v365
    %447 = vmatpush.bf16.msra.mxu0 %v363
    %448 = vmatpush.bf16.msra.mxu0 %v361
    %449 = vmatpush.bf16.msra.mxu0 %v359
    %450 = vmatpush.bf16.msra.mxu0 %v357
    %451 = vmatmul.bf16.gmra.mxu0 %v205
    %v452 = vpop.f32.mrf.mxu0
    %v453 = vadd.f32 %v440, %v452
    %v454 = vpop.f32.mrf.mxu0
    %455 = vdwg.mxu0
    %v456 = vmax.f32 %v427, 0.0
    %v457 = vmax.f32 %v453, 0.0
    %v458 = vpack.c.bf16 %v456, %v456
    %v459 = vpack.c.bf16 %v457, %v457
    %v460 = vld [vmem:[#allocation10] sm:$0xff]
    %v461 = vld [vmem:[#allocation10 + $0x8] sm:$0xff]
    %v462 = vld [vmem:[#allocation10 + $0x10] sm:$0xff]
    %v463 = vld [vmem:[#allocation10 + $0x18] sm:$0xf]
    %v464 = vld [vmem:[#allocation10 + $0x1c] sm:$0xff]
    %v465 = vld [vmem:[#allocation10 + $0x24] sm:$0xff]
    %v466 = vld [vmem:[#allocation10 + $0x2c] sm:$0xff]
    %v467 = vld [vmem:[#allocation10 + $0x34] sm:$0xf]
    %v468 = vld [vmem:[#allocation10 + $0x38] sm:$0xff]
    %v469 = vld [vmem:[#allocation10 + $0x40] sm:$0xff]
    %v470 = vld [vmem:[#allocation10 + $0x48] sm:$0xff]
    %v471 = vld [vmem:[#allocation10 + $0x50] sm:$0xf]
    %v472 = vld [vmem:[#allocation10 + $0x54] sm:$0xff]
    %v473 = vld [vmem:[#allocation10 + $0x5c] sm:$0xff]
    %v474 = vld [vmem:[#allocation10 + $0x64] sm:$0xff]
    %v475 = vld [vmem:[#allocation10 + $0x6c] sm:$0xf]
    %v476 = vld [vmem:[#allocation10 + $0x70] sm:$0xff]
    %v477 = vld [vmem:[#allocation10 + $0x78] sm:$0xff]
    %v478 = vld [vmem:[#allocation10 + $0x80] sm:$0xff]
    %v479 = vld [vmem:[#allocation10 + $0x88] sm:$0xf]
    %v480 = vld [vmem:[#allocation10 + $0x8c] sm:$0xff]
    %v481 = vld [vmem:[#allocation10 + $0x94] sm:$0xff]
    %v482 = vld [vmem:[#allocation10 + $0x9c] sm:$0xff]
    %v483 = vld [vmem:[#allocation10 + $0xa4] sm:$0xf]
    %v484 = vld [vmem:[#allocation10 + $0xa8] sm:$0xff]
    %v485 = vld [vmem:[#allocation10 + $0xb0] sm:$0xff]
    %v486 = vld [vmem:[#allocation10 + $0xb8] sm:$0xff]
    %v487 = vld [vmem:[#allocation10 + $0xc0] sm:$0xf]
    %v488 = vld [vmem:[#allocation10 + $0xc4] sm:$0xff]
    %v489 = vld [vmem:[#allocation10 + $0xcc] sm:$0xff]
    %v490 = vld [vmem:[#allocation10 + $0xd4] sm:$0xff]
    %v491 = vld [vmem:[#allocation10 + $0xdc] sm:$0xf]
    %v492 = vld [vmem:[#allocation10 + $0xe0] sm:$0xff]
    %v493 = vld [vmem:[#allocation10 + $0xe8] sm:$0xff]
    %v494 = vld [vmem:[#allocation10 + $0xf0] sm:$0xff]
    %v495 = vld [vmem:[#allocation10 + $0xf8] sm:$0xf]
    %v496 = vld [vmem:[#allocation10 + $0xfc] sm:$0xff]
    %v497 = vld [vmem:[#allocation10 + $0x104] sm:$0xff]
    %v498 = vld [vmem:[#allocation10 + $0x10c] sm:$0xff]
    %v499 = vld [vmem:[#allocation10 + $0x114] sm:$0xf]
    %v500 = vld [vmem:[#allocation10 + $0x118] sm:$0xff]
    %v501 = vld [vmem:[#allocation10 + $0x120] sm:$0xff]
    %v502 = vld [vmem:[#allocation10 + $0x128] sm:$0xff]
    %v503 = vld [vmem:[#allocation10 + $0x130] sm:$0xf]
    %v504 = vld [vmem:[#allocation10 + $0x134] sm:$0xff]
    %v505 = vld [vmem:[#allocation10 + $0x13c] sm:$0xff]
    %v506 = vld [vmem:[#allocation10 + $0x144] sm:$0xff]
    %v507 = vld [vmem:[#allocation10 + $0x14c] sm:$0xf]
    %v508 = vld [vmem:[#allocation10 + $0x150] sm:$0xff]
    %v509 = vld [vmem:[#allocation10 + $0x158] sm:$0xff]
    %v510 = vld [vmem:[#allocation10 + $0x160] sm:$0xff]
    %v511 = vld [vmem:[#allocation10 + $0x168] sm:$0xf]
    %v512 = vld [vmem:[#allocation10 + $0x16c] sm:$0xff]
    %v513 = vld [vmem:[#allocation10 + $0x174] sm:$0xff]
    %v514 = vld [vmem:[#allocation10 + $0x17c] sm:$0xff]
    %v515 = vld [vmem:[#allocation10 + $0x184] sm:$0xf]
    %v516 = vld [vmem:[#allocation10 + $0x188] sm:$0xff]
    %v517 = vld [vmem:[#allocation10 + $0x190] sm:$0xff]
    %v518 = vld [vmem:[#allocation10 + $0x198] sm:$0xff]
    %v519 = vld [vmem:[#allocation10 + $0x1a0] sm:$0xf]
    %v520 = vld [vmem:[#allocation10 + $0x1a4] sm:$0xff]
    %v521 = vld [vmem:[#allocation10 + $0x1ac] sm:$0xff]
    %v522 = vld [vmem:[#allocation10 + $0x1b4] sm:$0xff]
    %v523 = vld [vmem:[#allocation10 + $0x1bc] sm:$0xf]
    %v524 = vld [vmem:[#allocation10 + $0x1c0] sm:$0xff]
    %v525 = vld [vmem:[#allocation10 + $0x1c8] sm:$0xff]
    %v526 = vld [vmem:[#allocation10 + $0x1d0] sm:$0xff]
    %v527 = vld [vmem:[#allocation10 + $0x1d8] sm:$0xf]
    %v528 = vld [vmem:[#allocation10 + $0x1dc] sm:$0xff]
    %v529 = vld [vmem:[#allocation10 + $0x1e4] sm:$0xff]
    %v530 = vld [vmem:[#allocation10 + $0x1ec] sm:$0xff]
    %v531 = vld [vmem:[#allocation10 + $0x1f4] sm:$0xf]
    %v532 = vld [vmem:[#allocation10 + $0x1f8] sm:$0xff]
    %v533 = vld [vmem:[#allocation10 + $0x200] sm:$0xff]
    %v534 = vld [vmem:[#allocation10 + $0x208] sm:$0xff]
    %v535 = vld [vmem:[#allocation10 + $0x210] sm:$0xf]
    %v536 = vld [vmem:[#allocation10 + $0x214] sm:$0xff]
    %v537 = vld [vmem:[#allocation10 + $0x21c] sm:$0xff]
    %v538 = vld [vmem:[#allocation10 + $0x224] sm:$0xff]
    %v539 = vld [vmem:[#allocation10 + $0x22c] sm:$0xf]
    %v540 = vld [vmem:[#allocation10 + $0x230] sm:$0xff]
    %v541 = vld [vmem:[#allocation10 + $0x238] sm:$0xff]
    %v542 = vld [vmem:[#allocation10 + $0x240] sm:$0xff]
    %v543 = vld [vmem:[#allocation10 + $0x248] sm:$0xf]
    %v544 = vld [vmem:[#allocation10 + $0x24c] sm:$0xff]
    %v545 = vld [vmem:[#allocation10 + $0x254] sm:$0xff]
    %v546 = vld [vmem:[#allocation10 + $0x25c] sm:$0xff]
    %v547 = vld [vmem:[#allocation10 + $0x264] sm:$0xf]
    %v548 = vld [vmem:[#allocation10 + $0x268] sm:$0xff]
    %v549 = vld [vmem:[#allocation10 + $0x270] sm:$0xff]
    %v550 = vld [vmem:[#allocation10 + $0x278] sm:$0xff]
    %v551 = vld [vmem:[#allocation10 + $0x280] sm:$0xf]
    %v552 = vld [vmem:[#allocation10 + $0x284] sm:$0xff]
    %v553 = vld [vmem:[#allocation10 + $0x28c] sm:$0xff]
    %v554 = vld [vmem:[#allocation10 + $0x294] sm:$0xff]
    %v555 = vld [vmem:[#allocation10 + $0x29c] sm:$0xf]
    %v556 = vld [vmem:[#allocation10 + $0x2a0] sm:$0xff]
    %v557 = vld [vmem:[#allocation10 + $0x2a8] sm:$0xff]
    %v558 = vld [vmem:[#allocation10 + $0x2b0] sm:$0xff]
    %v559 = vld [vmem:[#allocation10 + $0x2b8] sm:$0xf]
    %v560 = vld [vmem:[#allocation10 + $0x2bc] sm:$0xff]
    %v561 = vld [vmem:[#allocation10 + $0x2c4] sm:$0xff]
    %v562 = vld [vmem:[#allocation10 + $0x2cc] sm:$0xff]
    %v563 = vld [vmem:[#allocation10 + $0x2d4] sm:$0xf]
    %v564 = vld [vmem:[#allocation10 + $0x2d8] sm:$0xff]
    %v565 = vld [vmem:[#allocation10 + $0x2e0] sm:$0xff]
    %v566 = vld [vmem:[#allocation10 + $0x2e8] sm:$0xff]
    %v567 = vld [vmem:[#allocation10 + $0x2f0] sm:$0xf]
    %v568 = vld [vmem:[#allocation10 + $0x2f4] sm:$0xff]
    %v569 = vld [vmem:[#allocation10 + $0x2fc] sm:$0xff]
    %v570 = vld [vmem:[#allocation10 + $0x304] sm:$0xff]
    %v571 = vld [vmem:[#allocation10 + $0x30c] sm:$0xf]
    %v572 = vld [vmem:[#allocation10 + $0x310] sm:$0xff]
    %v573 = vld [vmem:[#allocation10 + $0x318] sm:$0xff]
    %v574 = vld [vmem:[#allocation10 + $0x320] sm:$0xff]
    %v575 = vld [vmem:[#allocation10 + $0x328] sm:$0xf]
    %v576 = vld [vmem:[#allocation10 + $0x32c] sm:$0xff]
    %v577 = vld [vmem:[#allocation10 + $0x334] sm:$0xff]
    %v578 = vld [vmem:[#allocation10 + $0x33c] sm:$0xff]
    %v579 = vld [vmem:[#allocation10 + $0x344] sm:$0xf]
    %v580 = vld [vmem:[#allocation10 + $0x348] sm:$0xff]
    %v581 = vld [vmem:[#allocation10 + $0x350] sm:$0xff]
    %v582 = vld [vmem:[#allocation10 + $0x358] sm:$0xff]
    %v583 = vld [vmem:[#allocation10 + $0x360] sm:$0xf]
    %v584 = vld [vmem:[#allocation10 + $0x364] sm:$0xff]
    %v585 = vld [vmem:[#allocation10 + $0x36c] sm:$0xff]
    %v586 = vld [vmem:[#allocation10 + $0x374] sm:$0xff]
    %v587 = vld [vmem:[#allocation10 + $0x37c] sm:$0xf]
    %v588 = vld [vmem:[#allocation11] sm:$0xff]
    %v590 = vperm.slane %v588, 0
    %v591 = vperm.slane %v588, 1
    %v592 = vperm.slane %v588, 2
    %v593 = vperm.slane %v588, 3
    %v594 = vperm.slane %v588, 4
    %v595 = vperm.slane %v588, 5
    %v596 = vperm.slane %v588, 6
    %v732 = vunpack.c.l.b16 %v460
    %v733 = vunpack.c.h.b16 %v460
    %v734 = vunpack.c.l.b16 %v461
    %v735 = vunpack.c.h.b16 %v461
    %v736 = vunpack.c.l.b16 %v462
    %v737 = vunpack.c.h.b16 %v462
    %v738 = vunpack.c.l.b16 %v463
    %v739 = vunpack.c.l.b16 %v464
    %v740 = vunpack.c.h.b16 %v464
    %v741 = vunpack.c.l.b16 %v465
    %v742 = vunpack.c.h.b16 %v465
    %v743 = vunpack.c.l.b16 %v466
    %v744 = vunpack.c.h.b16 %v466
    %v745 = vunpack.c.l.b16 %v467
    %v746 = vunpack.c.l.b16 %v468
    %v747 = vunpack.c.h.b16 %v468
    %v748 = vunpack.c.l.b16 %v469
    %v749 = vunpack.c.h.b16 %v469
    %v750 = vunpack.c.l.b16 %v470
    %v751 = vunpack.c.h.b16 %v470
    %v752 = vunpack.c.l.b16 %v471
    %v753 = vunpack.c.l.b16 %v472
    %v754 = vunpack.c.h.b16 %v472
    %v755 = vunpack.c.l.b16 %v473
    %v756 = vunpack.c.h.b16 %v473
    %v757 = vunpack.c.l.b16 %v474
    %v758 = vunpack.c.h.b16 %v474
    %v759 = vunpack.c.l.b16 %v475
    %v760 = vunpack.c.l.b16 %v476
    %v761 = vunpack.c.h.b16 %v476
    %v762 = vunpack.c.l.b16 %v477
    %v763 = vunpack.c.h.b16 %v477
    %v764 = vunpack.c.l.b16 %v478
    %v765 = vunpack.c.h.b16 %v478
    %v766 = vunpack.c.l.b16 %v479
    %v767 = vunpack.c.l.b16 %v480
    %v768 = vunpack.c.h.b16 %v480
    %v769 = vunpack.c.l.b16 %v481
    %v770 = vunpack.c.h.b16 %v481
    %v771 = vunpack.c.l.b16 %v482
    %v772 = vunpack.c.h.b16 %v482
    %v773 = vunpack.c.l.b16 %v483
    %v774 = vunpack.c.l.b16 %v484
    %v775 = vunpack.c.h.b16 %v484
    %v776 = vunpack.c.l.b16 %v485
    %v777 = vunpack.c.h.b16 %v485
    %v778 = vunpack.c.l.b16 %v486
    %v779 = vunpack.c.h.b16 %v486
    %v780 = vunpack.c.l.b16 %v487
    %v781 = vunpack.c.l.b16 %v488
    %v782 = vunpack.c.h.b16 %v488
    %v783 = vunpack.c.l.b16 %v489
    %v784 = vunpack.c.h.b16 %v489
    %v785 = vunpack.c.l.b16 %v490
    %v786 = vunpack.c.h.b16 %v490
    %v787 = vunpack.c.l.b16 %v491
    %v788 = vunpack.c.l.b16 %v492
    %v789 = vunpack.c.h.b16 %v492
    %v790 = vunpack.c.l.b16 %v493
    %v791 = vunpack.c.h.b16 %v493
    %v792 = vunpack.c.l.b16 %v494
    %v793 = vunpack.c.h.b16 %v494
    %v794 = vunpack.c.l.b16 %v495
    %v795 = vunpack.c.l.b16 %v496
    %v796 = vunpack.c.h.b16 %v496
    %v797 = vunpack.c.l.b16 %v497
    %v798 = vunpack.c.h.b16 %v497
    %v799 = vunpack.c.l.b16 %v498
    %v800 = vunpack.c.h.b16 %v498
    %v801 = vunpack.c.l.b16 %v499
    %v802 = vunpack.c.l.b16 %v500
    %v803 = vunpack.c.h.b16 %v500
    %v804 = vunpack.c.l.b16 %v501
    %v805 = vunpack.c.h.b16 %v501
    %v806 = vunpack.c.l.b16 %v502
    %v807 = vunpack.c.h.b16 %v502
    %v808 = vunpack.c.l.b16 %v503
    %v809 = vunpack.c.l.b16 %v504
    %v810 = vunpack.c.h.b16 %v504
    %v811 = vunpack.c.l.b16 %v505
    %v812 = vunpack.c.h.b16 %v505
    %v813 = vunpack.c.l.b16 %v506
    %v814 = vunpack.c.h.b16 %v506
    %v815 = vunpack.c.l.b16 %v507
    %v816 = vunpack.c.l.b16 %v508
    %v817 = vunpack.c.h.b16 %v508
    %v818 = vunpack.c.l.b16 %v509
    %v819 = vunpack.c.h.b16 %v509
    %v820 = vunpack.c.l.b16 %v510
    %v821 = vunpack.c.h.b16 %v510
    %v822 = vunpack.c.l.b16 %v511
    %v823 = vunpack.c.l.b16 %v512
    %v824 = vunpack.c.h.b16 %v512
    %v825 = vunpack.c.l.b16 %v513
    %v826 = vunpack.c.h.b16 %v513
    %v827 = vunpack.c.l.b16 %v514
    %v828 = vunpack.c.h.b16 %v514
    %v829 = vunpack.c.l.b16 %v515
    %v830 = vunpack.c.l.b16 %v516
    %v831 = vunpack.c.h.b16 %v516
    %v832 = vunpack.c.l.b16 %v517
    %v833 = vunpack.c.h.b16 %v517
    %v834 = vunpack.c.l.b16 %v518
    %v835 = vunpack.c.h.b16 %v518
    %v836 = vunpack.c.l.b16 %v519
    %v837 = vunpack.c.l.b16 %v520
    %v838 = vunpack.c.h.b16 %v520
    %v839 = vunpack.c.l.b16 %v521
    %v840 = vunpack.c.h.b16 %v521
    %v841 = vunpack.c.l.b16 %v522
    %v842 = vunpack.c.h.b16 %v522
    %v843 = vunpack.c.l.b16 %v523
    %v844 = vunpack.c.l.b16 %v524
    %v845 = vunpack.c.h.b16 %v524
    %v846 = vunpack.c.l.b16 %v525
    %v847 = vunpack.c.h.b16 %v525
    %v848 = vunpack.c.l.b16 %v526
    %v849 = vunpack.c.h.b16 %v526
    %v850 = vunpack.c.l.b16 %v527
    %v851 = vunpack.c.l.b16 %v528
    %v852 = vunpack.c.h.b16 %v528
    %v853 = vunpack.c.l.b16 %v529
    %v854 = vunpack.c.h.b16 %v529
    %v855 = vunpack.c.l.b16 %v530
    %v856 = vunpack.c.h.b16 %v530
    %v857 = vunpack.c.l.b16 %v531
    %v858 = vunpack.c.l.b16 %v532
    %v859 = vunpack.c.h.b16 %v532
    %v860 = vunpack.c.l.b16 %v533
    %v861 = vunpack.c.h.b16 %v533
    %v862 = vunpack.c.l.b16 %v534
    %v863 = vunpack.c.h.b16 %v534
    %v864 = vunpack.c.l.b16 %v535
    %v865 = vunpack.c.l.b16 %v536
    %v866 = vunpack.c.h.b16 %v536
    %v867 = vunpack.c.l.b16 %v537
    %v868 = vunpack.c.h.b16 %v537
    %v869 = vunpack.c.l.b16 %v538
    %v870 = vunpack.c.h.b16 %v538
    %v871 = vunpack.c.l.b16 %v539
    %v872 = vunpack.c.l.b16 %v540
    %v873 = vunpack.c.h.b16 %v540
    %v874 = vunpack.c.l.b16 %v541
    %v875 = vunpack.c.h.b16 %v541
    %v876 = vunpack.c.l.b16 %v542
    %v877 = vunpack.c.h.b16 %v542
    %v878 = vunpack.c.l.b16 %v543
    %v879 = vunpack.c.l.b16 %v544
    %v880 = vunpack.c.h.b16 %v544
    %v881 = vunpack.c.l.b16 %v545
    %v882 = vunpack.c.h.b16 %v545
    %v883 = vunpack.c.l.b16 %v546
    %v884 = vunpack.c.h.b16 %v546
    %v885 = vunpack.c.l.b16 %v547
    %v886 = vunpack.c.l.b16 %v548
    %v887 = vunpack.c.h.b16 %v548
    %v888 = vunpack.c.l.b16 %v549
    %v889 = vunpack.c.h.b16 %v549
    %v890 = vunpack.c.l.b16 %v550
    %v891 = vunpack.c.h.b16 %v550
    %v892 = vunpack.c.l.b16 %v551
    %v893 = vunpack.c.l.b16 %v552
    %v894 = vunpack.c.h.b16 %v552
    %v895 = vunpack.c.l.b16 %v553
    %v896 = vunpack.c.h.b16 %v553
    %v897 = vunpack.c.l.b16 %v554
    %v898 = vunpack.c.h.b16 %v554
    %v899 = vunpack.c.l.b16 %v555
    %v900 = vunpack.c.l.b16 %v556
    %v901 = vunpack.c.h.b16 %v556
    %v902 = vunpack.c.l.b16 %v557
    %v903 = vunpack.c.h.b16 %v557
    %v904 = vunpack.c.l.b16 %v558
    %v905 = vunpack.c.h.b16 %v558
    %v906 = vunpack.c.l.b16 %v559
    %v907 = vunpack.c.l.b16 %v560
    %v908 = vunpack.c.h.b16 %v560
    %v909 = vunpack.c.l.b16 %v561
    %v910 = vunpack.c.h.b16 %v561
    %v911 = vunpack.c.l.b16 %v562
    %v912 = vunpack.c.h.b16 %v562
    %v913 = vunpack.c.l.b16 %v563
    %v914 = vunpack.c.l.b16 %v564
    %v915 = vunpack.c.h.b16 %v564
    %v916 = vunpack.c.l.b16 %v565
    %v917 = vunpack.c.h.b16 %v565
    %v918 = vunpack.c.l.b16 %v566
    %v919 = vunpack.c.h.b16 %v566
    %v920 = vunpack.c.l.b16 %v567
    %v921 = vunpack.c.l.b16 %v568
    %v922 = vunpack.c.h.b16 %v568
    %v923 = vunpack.c.l.b16 %v569
    %v924 = vunpack.c.h.b16 %v569
    %v925 = vunpack.c.l.b16 %v570
    %v926 = vunpack.c.h.b16 %v570
    %v927 = vunpack.c.l.b16 %v571
    %v928 = vunpack.c.l.b16 %v572
    %v929 = vunpack.c.h.b16 %v572
    %v930 = vunpack.c.l.b16 %v573
    %v931 = vunpack.c.h.b16 %v573
    %v932 = vunpack.c.l.b16 %v574
    %v933 = vunpack.c.h.b16 %v574
    %v934 = vunpack.c.l.b16 %v575
    %v935 = vunpack.c.l.b16 %v576
    %v936 = vunpack.c.h.b16 %v576
    %v937 = vunpack.c.l.b16 %v577
    %v938 = vunpack.c.h.b16 %v577
    %v939 = vunpack.c.l.b16 %v578
    %v940 = vunpack.c.h.b16 %v578
    %v941 = vunpack.c.l.b16 %v579
    %v942 = vunpack.c.l.b16 %v580
    %v943 = vunpack.c.h.b16 %v580
    %v944 = vunpack.c.l.b16 %v581
    %v945 = vunpack.c.h.b16 %v581
    %v946 = vunpack.c.l.b16 %v582
    %v947 = vunpack.c.h.b16 %v582
    %v948 = vunpack.c.l.b16 %v583
    %v949 = vunpack.c.l.b16 %v584
    %v950 = vunpack.c.h.b16 %v584
    %v951 = vunpack.c.l.b16 %v585
    %v952 = vunpack.c.h.b16 %v585
    %v953 = vunpack.c.l.b16 %v586
    %v954 = vunpack.c.h.b16 %v586
    %v955 = vunpack.c.l.b16 %v587
    %v956 = vpack.c.b16 %v739, %v732
    %v957 = vpack.c.b16 %v740, %v733
    %v958 = vpack.c.b16 %v741, %v734
    %v959 = vpack.c.b16 %v742, %v735
    %v960 = vpack.c.b16 %v743, %v736
    %v961 = vpack.c.b16 %v744, %v737
    %v962 = vpack.c.b16 %v745, %v738
    %v963 = vpack.c.b16 %v753, %v746
    %v964 = vpack.c.b16 %v754, %v747
    %v965 = vpack.c.b16 %v755, %v748
    %v966 = vpack.c.b16 %v756, %v749
    %v967 = vpack.c.b16 %v757, %v750
    %v968 = vpack.c.b16 %v758, %v751
    %v969 = vpack.c.b16 %v759, %v752
    %v970 = vpack.c.b16 %v767, %v760
    %v971 = vpack.c.b16 %v768, %v761
    %v972 = vpack.c.b16 %v769, %v762
    %v973 = vpack.c.b16 %v770, %v763
    %v974 = vpack.c.b16 %v771, %v764
    %v975 = vpack.c.b16 %v772, %v765
    %v976 = vpack.c.b16 %v773, %v766
    %v977 = vpack.c.b16 %v781, %v774
    %v978 = vpack.c.b16 %v782, %v775
    %v979 = vpack.c.b16 %v783, %v776
    %v980 = vpack.c.b16 %v784, %v777
    %v981 = vpack.c.b16 %v785, %v778
    %v982 = vpack.c.b16 %v786, %v779
    %v983 = vpack.c.b16 %v787, %v780
    %v984 = vpack.c.b16 %v795, %v788
    %v985 = vpack.c.b16 %v796, %v789
    %v986 = vpack.c.b16 %v797, %v790
    %v987 = vpack.c.b16 %v798, %v791
    %v988 = vpack.c.b16 %v799, %v792
    %v989 = vpack.c.b16 %v800, %v793
    %v990 = vpack.c.b16 %v801, %v794
    %v991 = vpack.c.b16 %v809, %v802
    %v992 = vpack.c.b16 %v810, %v803
    %v993 = vpack.c.b16 %v811, %v804
    %v994 = vpack.c.b16 %v812, %v805
    %v995 = vpack.c.b16 %v813, %v806
    %v996 = vpack.c.b16 %v814, %v807
    %v997 = vpack.c.b16 %v815, %v808
    %v998 = vpack.c.b16 %v823, %v816
    %v999 = vpack.c.b16 %v824, %v817
    %v1000 = vpack.c.b16 %v825, %v818
    %v1001 = vpack.c.b16 %v826, %v819
    %v1002 = vpack.c.b16 %v827, %v820
    %v1003 = vpack.c.b16 %v828, %v821
    %v1004 = vpack.c.b16 %v829, %v822
    %v1005 = vpack.c.b16 %v837, %v830
    %v1006 = vpack.c.b16 %v838, %v831
    %v1007 = vpack.c.b16 %v839, %v832
    %v1008 = vpack.c.b16 %v840, %v833
    %v1009 = vpack.c.b16 %v841, %v834
    %v1010 = vpack.c.b16 %v842, %v835
    %v1011 = vpack.c.b16 %v843, %v836
    %v1012 = vpack.c.b16 %v851, %v844
    %v1013 = vpack.c.b16 %v852, %v845
    %v1014 = vpack.c.b16 %v853, %v846
    %v1015 = vpack.c.b16 %v854, %v847
    %v1016 = vpack.c.b16 %v855, %v848
    %v1017 = vpack.c.b16 %v856, %v849
    %v1018 = vpack.c.b16 %v857, %v850
    %v1019 = vpack.c.b16 %v865, %v858
    %v1020 = vpack.c.b16 %v866, %v859
    %v1021 = vpack.c.b16 %v867, %v860
    %v1022 = vpack.c.b16 %v868, %v861
    %v1023 = vpack.c.b16 %v869, %v862
    %v1024 = vpack.c.b16 %v870, %v863
    %v1025 = vpack.c.b16 %v871, %v864
    %v1026 = vpack.c.b16 %v879, %v872
    %v1027 = vpack.c.b16 %v880, %v873
    %v1028 = vpack.c.b16 %v881, %v874
    %v1029 = vpack.c.b16 %v882, %v875
    %v1030 = vpack.c.b16 %v883, %v876
    %v1031 = vpack.c.b16 %v884, %v877
    %v1032 = vpack.c.b16 %v885, %v878
    %v1033 = vpack.c.b16 %v893, %v886
    %v1034 = vpack.c.b16 %v894, %v887
    %v1035 = vpack.c.b16 %v895, %v888
    %v1036 = vpack.c.b16 %v896, %v889
    %v1037 = vpack.c.b16 %v897, %v890
    %v1038 = vpack.c.b16 %v898, %v891
    %v1039 = vpack.c.b16 %v899, %v892
    %v1040 = vpack.c.b16 %v907, %v900
    %v1041 = vpack.c.b16 %v908, %v901
    %v1042 = vpack.c.b16 %v909, %v902
    %v1043 = vpack.c.b16 %v910, %v903
    %v1044 = vpack.c.b16 %v911, %v904
    %v1045 = vpack.c.b16 %v912, %v905
    %v1046 = vpack.c.b16 %v913, %v906
    %v1047 = vpack.c.b16 %v921, %v914
    %v1048 = vpack.c.b16 %v922, %v915
    %v1049 = vpack.c.b16 %v923, %v916
    %v1050 = vpack.c.b16 %v924, %v917
    %v1051 = vpack.c.b16 %v925, %v918
    %v1052 = vpack.c.b16 %v926, %v919
    %v1053 = vpack.c.b16 %v927, %v920
    %v1054 = vpack.c.b16 %v935, %v928
    %v1055 = vpack.c.b16 %v936, %v929
    %v1056 = vpack.c.b16 %v937, %v930
    %v1057 = vpack.c.b16 %v938, %v931
    %v1058 = vpack.c.b16 %v939, %v932
    %v1059 = vpack.c.b16 %v940, %v933
    %v1060 = vpack.c.b16 %v941, %v934
    %v1061 = vpack.c.b16 %v949, %v942
    %v1062 = vpack.c.b16 %v950, %v943
    %v1063 = vpack.c.b16 %v951, %v944
    %v1064 = vpack.c.b16 %v952, %v945
    %v1065 = vpack.c.b16 %v953, %v946
    %v1066 = vpack.c.b16 %v954, %v947
    %v1067 = vpack.c.b16 %v955, %v948
    %1180 = vmatpush.bf16.msra.mxu0 %v1005
    %1181 = vmatpush.bf16.msra.mxu0 %v998
    %1182 = vmatpush.bf16.msra.mxu0 %v991
    %1183 = vmatpush.bf16.msra.mxu0 %v984
    %1184 = vmatpush.bf16.msra.mxu0 %v977
    %1185 = vmatpush.bf16.msra.mxu0 %v970
    %1186 = vmatpush.bf16.msra.mxu0 %v963
    %1187 = vmatpush.bf16.msra.mxu0 %v956
    %1188 = vmatmul.bf16.gmra.mxu0 %v458
    %v1189 = vpop.f32.mrf.mxu0
    %v1190 = vadd.f32 %v590, %v1189
    %v1191 = vpop.f32.mrf.mxu0
    %1192 = vdwg.mxu0
    %1193 = vmatpush.bf16.msra.mxu0 %v1061
    %1194 = vmatpush.bf16.msra.mxu0 %v1054
    %1195 = vmatpush.bf16.msra.mxu0 %v1047
    %1196 = vmatpush.bf16.msra.mxu0 %v1040
    %1197 = vmatpush.bf16.msra.mxu0 %v1033
    %1198 = vmatpush.bf16.msra.mxu0 %v1026
    %1199 = vmatpush.bf16.msra.mxu0 %v1019
    %1200 = vmatpush.bf16.msra.mxu0 %v1012
    %1201 = vmatmul.bf16.gmra.mxu0 %v459
    %v1202 = vpop.f32.mrf.mxu0
    %v1203 = vadd.f32 %v1190, %v1202
    %v1204 = vpop.f32.mrf.mxu0
    %1205 = vdwg.mxu0
    %1206 = vmatpush.bf16.msra.mxu0 %v1006
    %1207 = vmatpush.bf16.msra.mxu0 %v999
    %1208 = vmatpush.bf16.msra.mxu0 %v992
    %1209 = vmatpush.bf16.msra.mxu0 %v985
    %1210 = vmatpush.bf16.msra.mxu0 %v978
    %1211 = vmatpush.bf16.msra.mxu0 %v971
    %1212 = vmatpush.bf16.msra.mxu0 %v964
    %1213 = vmatpush.bf16.msra.mxu0 %v957
    %1214 = vmatmul.bf16.gmra.mxu0 %v458
    %v1215 = vpop.f32.mrf.mxu0
    %v1216 = vadd.f32 %v591, %v1215
    %v1217 = vpop.f32.mrf.mxu0
    %1218 = vdwg.mxu0
    %1219 = vmatpush.bf16.msra.mxu0 %v1062
    %1220 = vmatpush.bf16.msra.mxu0 %v1055
    %1221 = vmatpush.bf16.msra.mxu0 %v1048
    %1222 = vmatpush.bf16.msra.mxu0 %v1041
    %1223 = vmatpush.bf16.msra.mxu0 %v1034
    %1224 = vmatpush.bf16.msra.mxu0 %v1027
    %1225 = vmatpush.bf16.msra.mxu0 %v1020
    %1226 = vmatpush.bf16.msra.mxu0 %v1013
    %1227 = vmatmul.bf16.gmra.mxu0 %v459
    %v1228 = vpop.f32.mrf.mxu0
    %v1229 = vadd.f32 %v1216, %v1228
    %v1230 = vpop.f32.mrf.mxu0
    %1231 = vdwg.mxu0
    %1232 = vmatpush.bf16.msra.mxu0 %v1007
    %1233 = vmatpush.bf16.msra.mxu0 %v1000
    %1234 = vmatpush.bf16.msra.mxu0 %v993
    %1235 = vmatpush.bf16.msra.mxu0 %v986
    %1236 = vmatpush.bf16.msra.mxu0 %v979
    %1237 = vmatpush.bf16.msra.mxu0 %v972
    %1238 = vmatpush.bf16.msra.mxu0 %v965
    %1239 = vmatpush.bf16.msra.mxu0 %v958
    %1240 = vmatmul.bf16.gmra.mxu0 %v458
    %v1241 = vpop.f32.mrf.mxu0
    %v1242 = vadd.f32 %v592, %v1241
    %v1243 = vpop.f32.mrf.mxu0
    %1244 = vdwg.mxu0
    %1245 = vmatpush.bf16.msra.mxu0 %v1063
    %1246 = vmatpush.bf16.msra.mxu0 %v1056
    %1247 = vmatpush.bf16.msra.mxu0 %v1049
    %1248 = vmatpush.bf16.msra.mxu0 %v1042
    %1249 = vmatpush.bf16.msra.mxu0 %v1035
    %1250 = vmatpush.bf16.msra.mxu0 %v1028
    %1251 = vmatpush.bf16.msra.mxu0 %v1021
    %1252 = vmatpush.bf16.msra.mxu0 %v1014
    %1253 = vmatmul.bf16.gmra.mxu0 %v459
    %v1254 = vpop.f32.mrf.mxu0
    %v1255 = vadd.f32 %v1242, %v1254
    %v1256 = vpop.f32.mrf.mxu0
    %1257 = vdwg.mxu0
    %1258 = vmatpush.bf16.msra.mxu0 %v1008
    %1259 = vmatpush.bf16.msra.mxu0 %v1001
    %1260 = vmatpush.bf16.msra.mxu0 %v994
    %1261 = vmatpush.bf16.msra.mxu0 %v987
    %1262 = vmatpush.bf16.msra.mxu0 %v980
    %1263 = vmatpush.bf16.msra.mxu0 %v973
    %1264 = vmatpush.bf16.msra.mxu0 %v966
    %1265 = vmatpush.bf16.msra.mxu0 %v959
    %1266 = vmatmul.bf16.gmra.mxu0 %v458
    %v1267 = vpop.f32.mrf.mxu0
    %v1268 = vadd.f32 %v593, %v1267
    %v1269 = vpop.f32.mrf.mxu0
    %1270 = vdwg.mxu0
    %1271 = vmatpush.bf16.msra.mxu0 %v1064
    %1272 = vmatpush.bf16.msra.mxu0 %v1057
    %1273 = vmatpush.bf16.msra.mxu0 %v1050
    %1274 = vmatpush.bf16.msra.mxu0 %v1043
    %1275 = vmatpush.bf16.msra.mxu0 %v1036
    %1276 = vmatpush.bf16.msra.mxu0 %v1029
    %1277 = vmatpush.bf16.msra.mxu0 %v1022
    %1278 = vmatpush.bf16.msra.mxu0 %v1015
    %1279 = vmatmul.bf16.gmra.mxu0 %v459
    %v1280 = vpop.f32.mrf.mxu0
    %v1281 = vadd.f32 %v1268, %v1280
    %v1282 = vpop.f32.mrf.mxu0
    %1283 = vdwg.mxu0
    %1284 = vmatpush.bf16.msra.mxu0 %v1009
    %1285 = vmatpush.bf16.msra.mxu0 %v1002
    %1286 = vmatpush.bf16.msra.mxu0 %v995
    %1287 = vmatpush.bf16.msra.mxu0 %v988
    %1288 = vmatpush.bf16.msra.mxu0 %v981
    %1289 = vmatpush.bf16.msra.mxu0 %v974
    %1290 = vmatpush.bf16.msra.mxu0 %v967
    %1291 = vmatpush.bf16.msra.mxu0 %v960
    %1292 = vmatmul.bf16.gmra.mxu0 %v458
    %v1293 = vpop.f32.mrf.mxu0
    %v1294 = vadd.f32 %v594, %v1293
    %v1295 = vpop.f32.mrf.mxu0
    %1296 = vdwg.mxu0
    %1297 = vmatpush.bf16.msra.mxu0 %v1065
    %1298 = vmatpush.bf16.msra.mxu0 %v1058
    %1299 = vmatpush.bf16.msra.mxu0 %v1051
    %1300 = vmatpush.bf16.msra.mxu0 %v1044
    %1301 = vmatpush.bf16.msra.mxu0 %v1037
    %1302 = vmatpush.bf16.msra.mxu0 %v1030
    %1303 = vmatpush.bf16.msra.mxu0 %v1023
    %1304 = vmatpush.bf16.msra.mxu0 %v1016
    %1305 = vmatmul.bf16.gmra.mxu0 %v459
    %v1306 = vpop.f32.mrf.mxu0
    %v1307 = vadd.f32 %v1294, %v1306
    %v1308 = vpop.f32.mrf.mxu0
    %1309 = vdwg.mxu0
    %1310 = vmatpush.bf16.msra.mxu0 %v1010
    %1311 = vmatpush.bf16.msra.mxu0 %v1003
    %1312 = vmatpush.bf16.msra.mxu0 %v996
    %1313 = vmatpush.bf16.msra.mxu0 %v989
    %1314 = vmatpush.bf16.msra.mxu0 %v982
    %1315 = vmatpush.bf16.msra.mxu0 %v975
    %1316 = vmatpush.bf16.msra.mxu0 %v968
    %1317 = vmatpush.bf16.msra.mxu0 %v961
    %1318 = vmatmul.bf16.gmra.mxu0 %v458
    %v1319 = vpop.f32.mrf.mxu0
    %v1320 = vadd.f32 %v595, %v1319
    %v1321 = vpop.f32.mrf.mxu0
    %1322 = vdwg.mxu0
    %1323 = vmatpush.bf16.msra.mxu0 %v1066
    %1324 = vmatpush.bf16.msra.mxu0 %v1059
    %1325 = vmatpush.bf16.msra.mxu0 %v1052
    %1326 = vmatpush.bf16.msra.mxu0 %v1045
    %1327 = vmatpush.bf16.msra.mxu0 %v1038
    %1328 = vmatpush.bf16.msra.mxu0 %v1031
    %1329 = vmatpush.bf16.msra.mxu0 %v1024
    %1330 = vmatpush.bf16.msra.mxu0 %v1017
    %1331 = vmatmul.bf16.gmra.mxu0 %v459
    %v1332 = vpop.f32.mrf.mxu0
    %v1333 = vadd.f32 %v1320, %v1332
    %v1334 = vpop.f32.mrf.mxu0
    %1335 = vdwg.mxu0
    %1336 = vmatpush.bf16.msra.mxu0 %v1011
    %1337 = vmatpush.bf16.msra.mxu0 %v1004
    %1338 = vmatpush.bf16.msra.mxu0 %v997
    %1339 = vmatpush.bf16.msra.mxu0 %v990
    %1340 = vmatpush.bf16.msra.mxu0 %v983
    %1341 = vmatpush.bf16.msra.mxu0 %v976
    %1342 = vmatpush.bf16.msra.mxu0 %v969
    %1343 = vmatpush.bf16.msra.mxu0 %v962
    %1344 = vmatmul.bf16.gmra.mxu0 %v458
    %v1345 = vpop.f32.mrf.mxu0
    %v1346 = vadd.f32 %v596, %v1345
    %v1347 = vpop.f32.mrf.mxu0
    %1348 = vdwg.mxu0
    %1349 = vmatpush.bf16.msra.mxu0 %v1067
    %1350 = vmatpush.bf16.msra.mxu0 %v1060
    %1351 = vmatpush.bf16.msra.mxu0 %v1053
    %1352 = vmatpush.bf16.msra.mxu0 %v1046
    %1353 = vmatpush.bf16.msra.mxu0 %v1039
    %1354 = vmatpush.bf16.msra.mxu0 %v1032
    %1355 = vmatpush.bf16.msra.mxu0 %v1025
    %1356 = vmatpush.bf16.msra.mxu0 %v1018
    %1357 = vmatmul.bf16.gmra.mxu0 %v459
    %v1358 = vpop.f32.mrf.mxu0
    %v1359 = vadd.f32 %v1346, %v1358
    %v1360 = vpop.f32.mrf.mxu0
    %1361 = vdwg.mxu0
    %v1362 = vtanh.pop %v1203
    %v1363 = vtanh.pop %v1229
    %v1364 = vtanh.pop %v1255
    %v1365 = vtanh.pop %v1281
    %v1366 = vtanh.pop %v1307
    %v1367 = vtanh.pop %v1333
    %v1368 = vtanh.pop %v1359
    %1369 = vst [vmem:[#allocation13] sm:$0xff] %v1362
    %1370 = vst [vmem:[#allocation13 + $0x8] sm:$0xff] %v1363
    %1371 = vst [vmem:[#allocation13 + $0x10] sm:$0xff] %v1364
    %1372 = vst [vmem:[#allocation13 + $0x18] sm:$0xff] %v1365
    %1373 = vst [vmem:[#allocation13 + $0x20] sm:$0xff] %v1366
    %1374 = vst [vmem:[#allocation13 + $0x28] sm:$0xff] %v1367
    %1375 = vst [vmem:[#allocation13 + $0x30] sm:$0xff] %v1368
    // Predicated region
    $region54: #{tpu_custom_call.1} parent=1 // pred_check
      _
    $region55: #{tpu_custom_call.1} parent=1 // pred_check_branch
      %1377 = sbr.rel (0) target = $region57
    $region56: #{tpu_custom_call.1} parent=1 // pred_region
      %1379 = vsyncadd [#allocation4], 0
      %s1381 = sshll.u32 [#allocation13], 4
      %s1382 = int_to_ptr.vmem [resolvable:$true] %s1381
      %s1383 = sshll.u32 %s7, 4
      %s1384 = int_to_ptr.hbm [resolvable:$true] %s1383
      %1386 = dma.vmem_to_hbm [thread:$0]  %s1382, 896, %s1384, [#allocation4]
    $region57: #{tpu_custom_call.1} parent=1 // pred_fallthru
      _
    // Predicated region
    $region58: #{tpu_custom_call.1} parent=1 // pred_check
      _
    $region59: #{tpu_custom_call.1} parent=1 // pred_check_branch
      %1388 = sbr.rel (0) target = $region61
    $region60: #{tpu_custom_call.1} parent=1 // pred_region
      %1390 = dma.done [#allocation4], 896
    $region61: #{tpu_custom_call.1} parent=1 // pred_fallthru
      _
    %1391 = vsyncpa [#allocation3], 1
    %1392 = vsyncpa [#allocation6], 1
    %1393 = vsyncpa [#allocation9], 1
    %1394 = vsyncpa [#allocation12], 1
    %1395 = vsyncpa [#allocation4], 1

</llo_original>
